<compile_context>
chip_gen: v6e
topology: v6e:2x2x1
jax: 0.10.0
libtpu: 0.0.40
codegen_flags: <defaults>
</compile_context>

<pallas_src>
import functools

import jax
import jax.numpy as jnp
from jax.experimental import pallas as pl
from jax.experimental.pallas import tpu as pltpu

_LANE = 128     # lane width: last-dim alignment target
_SUBLANE = 8    # sublane width: second-to-last-dim alignment target
_MEGACORE_SPLIT_ROWS = 256  # batch size at which we force >=2 grid steps


def _round_up(n, m):
    return ((n + m - 1) // m) * m


def _pad_2d(a, rows, cols):
    r, c = a.shape
    if r == rows and c == cols:
        return a
    return jnp.pad(a, ((0, rows - r), (0, cols - c)))


def _mlp_kernel(x_ref, w1_ref, b1_ref, w2_ref, b2_ref, w3_ref, b3_ref, o_ref):
    # Layer 1: Linear + ReLU   (dropout = identity in eval mode)
    h1 = jnp.dot(x_ref[...], w1_ref[...], preferred_element_type=jnp.float32)
    h1 = jnp.maximum(h1 + b1_ref[...], 0.0)

    # Layer 2: Linear + ReLU   (dropout = identity in eval mode)
    h2 = jnp.dot(h1.astype(w2_ref.dtype), w2_ref[...],
                 preferred_element_type=jnp.float32)
    h2 = jnp.maximum(h2 + b2_ref[...], 0.0)

    # Layer 3: Linear
    out = jnp.dot(h2.astype(w3_ref.dtype), w3_ref[...],
                  preferred_element_type=jnp.float32) + b3_ref[...]
    o_ref[...] = out.astype(o_ref.dtype)


def prepare_params(params, compute_dtype=jnp.float32):
    """One-time weight prep: pad to lane multiples and cast to compute dtype.

    Hoisted out of the forward so repeated eval calls don't re-pad / re-cast
    the weights (extra HBM traffic) on every generation step.
    Zero padding is numerically exact: padded hidden units are relu(0+0)=0 and
    padded weight rows/cols contribute nothing; padded output columns are
    sliced away outside the kernel.

    Returns (padded_arrays, dims) where dims = (FI, H, FO, FI_p, H_p, FO_p)
    are plain Python ints (static under jit).
    """
    FI, H = params["w1"].shape
    FO = params["w3"].shape[1]
    FI_p = _round_up(FI, _LANE)
    H_p = _round_up(H, _LANE)
    FO_p = _round_up(FO, _LANE)
    padded = {
        "w1": _pad_2d(params["w1"], FI_p, H_p).astype(compute_dtype),
        "w2": _pad_2d(params["w2"], H_p, H_p).astype(compute_dtype),
        "w3": _pad_2d(params["w3"], H_p, FO_p).astype(compute_dtype),
        # Biases stay f32: they're added on the f32 MXU accumulator.
        "b1": _pad_2d(params["b1"], 1, H_p).astype(jnp.float32),
        "b2": _pad_2d(params["b2"], 1, H_p).astype(jnp.float32),
        "b3": _pad_2d(params["b3"], 1, FO_p).astype(jnp.float32),
    }
    return padded, (FI, H, FO, FI_p, H_p, FO_p)


def _default_batch_tile(B_r):
    # Single grid step for small batches (per-step overhead ~0.35us), but at
    # least two "parallel" steps once the batch is big enough so v7x's two
    # TensorCores can both be used (v5e/v6e single-TC: grid is just a loop).
    if B_r < _MEGACORE_SPLIT_ROWS:
        return min(512, B_r)
    half = _round_up((B_r + 1) // 2, _SUBLANE)
    return min(512, half)


def _derived_vmem_limit(batch_tile, FI_p, H_p, FO_p, cbytes, obytes):
    # Shape-derived VMEM budget (replaces the old blanket 64 MiB, which is
    # v7x's entire physical VMEM per TensorCore).
    x_tile = 2 * batch_tile * FI_p * cbytes               # double-buffered x
    out_tile = 2 * batch_tile * FO_p * obytes             # double-buffered out
    weights = (FI_p * H_p + H_p * H_p + H_p * FO_p) * cbytes   # Buffered(1)
    biases = (2 * H_p + FO_p) * 4
    temps = 2 * batch_tile * H_p * 4                      # h1 / h2 f32
    need = x_tile + out_tile + weights + biases + temps
    # 1.5x headroom for Mosaic internal scratch; cap below physical VMEM of
    # the largest generation (v5e/v6e: 128 MiB).
    return int(min(need * 1.5 + (4 << 20), 100 << 20))


def discriminator_block_forward(x, prepared, dims, *, batch_tile=None,
                                vmem_limit_bytes=None, training=False):
    """Fused eval-mode forward pass of DiscriminatorBlock.

    x: (B, features_in)
    prepared, dims: output of prepare_params(params, compute_dtype)
    """
    if training:
        raise NotImplementedError(
            "training-mode dropout not implemented; eval mode only")

    FI, H, FO, FI_p, H_p, FO_p = dims
    B = x.shape[0]
    assert x.shape[1] == FI, (x.shape, FI)
    compute_dtype = prepared["w1"].dtype

    B_r = _round_up(B, _SUBLANE)
    if batch_tile is None:
        batch_tile = _default_batch_tile(B_r)
    batch_tile = _round_up(batch_tile, _SUBLANE)
    B_p = _round_up(B_r, batch_tile)
    grid = (B_p // batch_tile,)

    # Only x is padded per call (it's new data every call anyway).
    xp = _pad_2d(x, B_p, FI_p).astype(compute_dtype)

    cbytes = jnp.dtype(compute_dtype).itemsize
    obytes = jnp.dtype(x.dtype).itemsize
    if vmem_limit_bytes is None:
        vmem_limit_bytes = _derived_vmem_limit(
            batch_tile, FI_p, H_p, FO_p, cbytes, obytes)

    weight_bytes = ((FI_p * H_p + H_p * H_p + H_p * FO_p) * cbytes
                    + (2 * H_p + FO_p) * 4)
    cost = pl.CostEstimate(
        flops=2 * B_p * (FI_p * H_p + H_p * H_p + H_p * FO_p),
        transcendentals=0,
        bytes_accessed=B_p * FI_p * cbytes + weight_bytes + B_p * FO_p * obytes,
    )

    # Weights / biases have a constant index_map (resident every grid step);
    # single-buffer them so VMEM isn't doubled for blocks that never change.
    def _const_spec(shape):
        return pl.BlockSpec(shape, lambda i: (0, 0),
                            pipeline_mode=pl.Buffered(1))

    # NOTE: FO is padded to a 128-lane multiple for an unmasked output store;
    # for tiny heads (FO ~ 1-4) the inflated writeback is negligible at these
    # sizes, but leaving FO unpadded (full-dim block) is a valid alternative.
    out_p = pl.pallas_call(
        _mlp_kernel,
        out_shape=jax.ShapeDtypeStruct((B_p, FO_p), x.dtype),
        grid_spec=pltpu.PrefetchScalarGridSpec(
            num_scalar_prefetch=0,
            grid=grid,
            in_specs=[
                # x: tiled over the batch dimension only (double-buffered).
                pl.BlockSpec((batch_tile, FI_p), lambda i: (i, 0)),
                # Weights / biases: full, single-buffered, constant blocks.
                _const_spec((FI_p, H_p)),
                _const_spec((1, H_p)),
                _const_spec((H_p, H_p)),
                _const_spec((1, H_p)),
                _const_spec((H_p, FO_p)),
                _const_spec((1, FO_p)),
            ],
            out_specs=pl.BlockSpec((batch_tile, FO_p), lambda i: (i, 0)),
        ),
        compiler_params=pltpu.CompilerParams(
            dimension_semantics=("parallel",),
            vmem_limit_bytes=vmem_limit_bytes,
        ),
        cost_estimate=cost,
    )(xp, prepared["w1"], prepared["b1"], prepared["w2"], prepared["b2"],
      prepared["w3"], prepared["b3"])

    # Strip batch / lane padding outside the kernel.
    return out_p[:B, :FO]


def init_params(key, features_in, features_out):
    """Deterministic init mirroring PyTorch nn.Linear default:
    weight, bias ~ U(-1/sqrt(fan_in), 1/sqrt(fan_in)).
    Weights are stored pre-transposed as (in, out)."""
    H = features_in // 2
    ks = jax.random.split(key, 6)

    def lin(kw, kb, fan_in, fan_out):
        bound = 1.0 / jnp.sqrt(jnp.float32(fan_in))
        w = jax.random.uniform(kw, (fan_in, fan_out), jnp.float32, -bound, bound)
        b = jax.random.uniform(kb, (1, fan_out), jnp.float32, -bound, bound)
        return w, b

    w1, b1 = lin(ks[0], ks[1], features_in, H)
    w2, b2 = lin(ks[2], ks[3], H, H)
    w3, b3 = lin(ks[4], ks[5], H, features_out)
    return {"w1": w1, "b1": b1, "w2": w2, "b2": b2, "w3": w3, "b3": b3}


def _reference_forward(x, p):
    h1 = jnp.maximum(x @ p["w1"] + p["b1"], 0.0)
    h2 = jnp.maximum(h1 @ p["w2"] + p["b2"], 0.0)
    return h2 @ p["w3"] + p["b3"]


if __name__ == "__main__":
    key = jax.random.PRNGKey(0)

    # Case 1: module's toy shape (features_in=64 -> hidden=32, features_out=4),
    # f32 operands, single grid step.
    B, FI, FO = 16, 64, 4
    kx, kp, key = jax.random.split(key, 3)
    x = jax.random.normal(kx, (B, FI), jnp.float32)
    params = init_params(kp, FI, FO)
    prepared, dims = prepare_params(params, compute_dtype=jnp.float32)
    fwd = jax.jit(functools.partial(discriminator_block_forward, dims=dims))
    out = jax.block_until_ready(fwd(x, prepared))
    ref = _reference_forward(x, params)
    assert out.shape == (B, FO)
    assert jnp.allclose(out, ref, atol=1e-5, rtol=1e-5), \
        "mismatch vs reference (case 1, f32)"

    # Case 2: larger non-divisible batch -> multi-step "parallel" grid
    # (megacore-shardable) + bf16 operands with f32 accumulation.
    B2, FI2, FO2 = 300, 96, 10
    kx2, kp2 = jax.random.split(key)
    x2 = jax.random.normal(kx2, (B2, FI2), jnp.float32)
    params2 = init_params(kp2, FI2, FO2)
    prepared2, dims2 = prepare_params(params2, compute_dtype=jnp.bfloat16)
    fwd2 = jax.jit(functools.partial(discriminator_block_forward, dims=dims2))
    out2 = jax.block_until_ready(fwd2(x2, prepared2))
    ref2 = _reference_forward(x2, params2)
    assert out2.shape == (B2, FO2)
    # bf16 operands: looser tolerance (expected rounding, not a bug).
    assert jnp.allclose(out2, ref2, atol=1e-1, rtol=5e-2), \
        "mismatch vs reference (case 2, bf16)"

    print("KERNEL_OK")
</pallas_src>

<mosaic_0001>
module attributes {stable_mosaic.version = 11 : i64} {
  func.func @_mlp_kernel(%arg0: i32, %arg1: memref<16x128xf32, #tpu.memory_space<vmem>>, %arg2: memref<128x128xf32, #tpu.memory_space<vmem>>, %arg3: memref<1x128xf32, #tpu.memory_space<vmem>>, %arg4: memref<128x128xf32, #tpu.memory_space<vmem>>, %arg5: memref<1x128xf32, #tpu.memory_space<vmem>>, %arg6: memref<128x128xf32, #tpu.memory_space<vmem>>, %arg7: memref<1x128xf32, #tpu.memory_space<vmem>>, %arg8: memref<16x128xf32, #tpu.memory_space<vmem>>) attributes {dimension_semantics = [#tpu.dimension_semantics<parallel>], iteration_bounds = array<i64: 1>, scalar_prefetch = 0 : i64, scratch_operands = 0 : i64, tpu.core_type = #tpu.core_type<tc>, window_params = [{transform_indices = @transform_0, window_bounds = array<i64: 16, 128>}, {pipeline_mode = #tpu.pipeline_mode<synchronous>, transform_indices = @transform_1, window_bounds = array<i64: 128, 128>}, {pipeline_mode = #tpu.pipeline_mode<synchronous>, transform_indices = @transform_2, window_bounds = array<i64: 1, 128>}, {pipeline_mode = #tpu.pipeline_mode<synchronous>, transform_indices = @transform_3, window_bounds = array<i64: 128, 128>}, {pipeline_mode = #tpu.pipeline_mode<synchronous>, transform_indices = @transform_4, window_bounds = array<i64: 1, 128>}, {pipeline_mode = #tpu.pipeline_mode<synchronous>, transform_indices = @transform_5, window_bounds = array<i64: 128, 128>}, {pipeline_mode = #tpu.pipeline_mode<synchronous>, transform_indices = @transform_6, window_bounds = array<i64: 1, 128>}, {transform_indices = @transform_7, window_bounds = array<i64: 16, 128>}]} {
    %c0 = arith.constant 0 : index
    %c0_0 = arith.constant 0 : index
    %0 = vector.load %arg1[%c0, %c0_0] : memref<16x128xf32, #tpu.memory_space<vmem>>, vector<16x128xf32>
    %c0_1 = arith.constant 0 : index
    %c0_2 = arith.constant 0 : index
    %1 = vector.load %arg2[%c0_1, %c0_2] : memref<128x128xf32, #tpu.memory_space<vmem>>, vector<128x128xf32>
    %cst = arith.constant dense<0.000000e+00> : vector<16x128xf32>
    %2 = tpu.matmul %0, %1, %cst {dimension_numbers = #tpu.dot_dimension_numbers<[1], [0], [0], [1], [0, 0, 1, 1], [], []>} : vector<16x128xf32>, vector<128x128xf32>, vector<16x128xf32> -> vector<16x128xf32>
    %c0_3 = arith.constant 0 : index
    %c0_4 = arith.constant 0 : index
    %3 = vector.load %arg3[%c0_3, %c0_4] : memref<1x128xf32, #tpu.memory_space<vmem>>, vector<1x128xf32>
    %4 = vector.broadcast %3 : vector<1x128xf32> to vector<16x128xf32>
    %5 = arith.addf %2, %4 : vector<16x128xf32>
    %cst_5 = arith.constant 0.000000e+00 : f32
    %6 = vector.broadcast %cst_5 : f32 to vector<16x128xf32>
    %7 = arith.maximumf %5, %6 : vector<16x128xf32>
    %c0_6 = arith.constant 0 : index
    %c0_7 = arith.constant 0 : index
    %8 = vector.load %arg4[%c0_6, %c0_7] : memref<128x128xf32, #tpu.memory_space<vmem>>, vector<128x128xf32>
    %cst_8 = arith.constant dense<0.000000e+00> : vector<16x128xf32>
    %9 = tpu.matmul %7, %8, %cst_8 {dimension_numbers = #tpu.dot_dimension_numbers<[1], [0], [0], [1], [0, 0, 1, 1], [], []>} : vector<16x128xf32>, vector<128x128xf32>, vector<16x128xf32> -> vector<16x128xf32>
    %c0_9 = arith.constant 0 : index
    %c0_10 = arith.constant 0 : index
    %10 = vector.load %arg5[%c0_9, %c0_10] : memref<1x128xf32, #tpu.memory_space<vmem>>, vector<1x128xf32>
    %11 = vector.broadcast %10 : vector<1x128xf32> to vector<16x128xf32>
    %12 = arith.addf %9, %11 : vector<16x128xf32>
    %cst_11 = arith.constant 0.000000e+00 : f32
    %13 = vector.broadcast %cst_11 : f32 to vector<16x128xf32>
    %14 = arith.maximumf %12, %13 : vector<16x128xf32>
    %c0_12 = arith.constant 0 : index
    %c0_13 = arith.constant 0 : index
    %15 = vector.load %arg6[%c0_12, %c0_13] : memref<128x128xf32, #tpu.memory_space<vmem>>, vector<128x128xf32>
    %cst_14 = arith.constant dense<0.000000e+00> : vector<16x128xf32>
    %16 = tpu.matmul %14, %15, %cst_14 {dimension_numbers = #tpu.dot_dimension_numbers<[1], [0], [0], [1], [0, 0, 1, 1], [], []>} : vector<16x128xf32>, vector<128x128xf32>, vector<16x128xf32> -> vector<16x128xf32>
    %c0_15 = arith.constant 0 : index
    %c0_16 = arith.constant 0 : index
    %17 = vector.load %arg7[%c0_15, %c0_16] : memref<1x128xf32, #tpu.memory_space<vmem>>, vector<1x128xf32>
    %18 = vector.broadcast %17 : vector<1x128xf32> to vector<16x128xf32>
    %19 = arith.addf %16, %18 : vector<16x128xf32>
    %c0_17 = arith.constant 0 : index
    %c0_18 = arith.constant 0 : index
    %20 = vector.load %arg8[%c0_17, %c0_18] : memref<16x128xf32, #tpu.memory_space<vmem>>, vector<16x128xf32>
    tpu.vector_store %arg8[%c0_17, %c0_18], %19 {strides = array<i32>} : memref<16x128xf32, #tpu.memory_space<vmem>>, vector<16x128xf32>,
    return
  }
  func.func @transform_0(%arg0: i32) -> (i32, i32) {
    %c0_i32 = arith.constant 0 : i32
    %c0_i32_0 = arith.constant 0 : i32
    return %arg0, %c0_i32 : i32, i32
  }
  func.func @transform_1(%arg0: i32) -> (i32, i32) {
    %c0_i32 = arith.constant 0 : i32
    %c0_i32_0 = arith.constant 0 : i32
    %c0_i32_1 = arith.constant 0 : i32
    return %c0_i32, %c0_i32_0 : i32, i32
  }
  func.func @transform_2(%arg0: i32) -> (i32, i32) {
    %c0_i32 = arith.constant 0 : i32
    %c0_i32_0 = arith.constant 0 : i32
    %c0_i32_1 = arith.constant 0 : i32
    return %c0_i32, %c0_i32_0 : i32, i32
  }
  func.func @transform_3(%arg0: i32) -> (i32, i32) {
    %c0_i32 = arith.constant 0 : i32
    %c0_i32_0 = arith.constant 0 : i32
    %c0_i32_1 = arith.constant 0 : i32
    return %c0_i32, %c0_i32_0 : i32, i32
  }
  func.func @transform_4(%arg0: i32) -> (i32, i32) {
    %c0_i32 = arith.constant 0 : i32
    %c0_i32_0 = arith.constant 0 : i32
    %c0_i32_1 = arith.constant 0 : i32
    return %c0_i32, %c0_i32_0 : i32, i32
  }
  func.func @transform_5(%arg0: i32) -> (i32, i32) {
    %c0_i32 = arith.constant 0 : i32
    %c0_i32_0 = arith.constant 0 : i32
    %c0_i32_1 = arith.constant 0 : i32
    return %c0_i32, %c0_i32_0 : i32, i32
  }
  func.func @transform_6(%arg0: i32) -> (i32, i32) {
    %c0_i32 = arith.constant 0 : i32
    %c0_i32_0 = arith.constant 0 : i32
    %c0_i32_1 = arith.constant 0 : i32
    return %c0_i32, %c0_i32_0 : i32, i32
  }
  func.func @transform_7(%arg0: i32) -> (i32, i32) {
    %c0_i32 = arith.constant 0 : i32
    %c0_i32_0 = arith.constant 0 : i32
    return %arg0, %c0_i32 : i32, i32
  }
}

</mosaic_0001>

<llo_original>
// kernel: discriminator_block_forward.1
$region0: #{discriminator_block_forward.1}
  #allocation0 [shape = 'u32[]', space=smem, size = 0x4, offset = 0x4, fixed_abs, tag = 'smem constant byte address 0x4 - core index']
  #allocation1 [shape = 'u32[144,128]{1,0:T(1,128)}', space=vmem, size = 0x12000, scoped, tag = 'internal scratch']
  %s0 = inlined_call_operand.vmem [shape: f32[16,128], index: 0, kind: input, shape index: {}]
  %s1 = inlined_call_operand.hbm [shape: f32[128,128], index: 1, kind: input, shape index: {}]
  %s2 = inlined_call_operand.vmem [shape: f32[1,128], index: 2, kind: input, shape index: {}]
  %s3 = inlined_call_operand.hbm [shape: f32[128,128], index: 3, kind: input, shape index: {}]
  %s4 = inlined_call_operand.vmem [shape: f32[1,128], index: 4, kind: input, shape index: {}]
  %s5 = inlined_call_operand.hbm [shape: f32[128,128], index: 5, kind: input, shape index: {}]
  %s6 = inlined_call_operand.vmem [shape: f32[1,128], index: 6, kind: input, shape index: {}]
  %s7 = inlined_call_operand.vmem [shape: f32[16,128], index: 7, kind: output, shape index: {}]
  %s8 = sld [smem:[#allocation0]]
  $region50: #{discriminator_block_forward.1} parent=0
    _
  %s10 = ssub.s32 1, %s8
  %s11 = scalar_select 0, %s10, %s8
  $region1: #{discriminator_block_forward.1} parent=0
    #allocation2 [shape = 'u8[65536]{0}', space=vmem, size = 0x10000, scoped, tag = 'input window, operand 1, single buffered']
    #allocation3 [shape = 's32[1]{0}', space=sflag, size = 0x4, scoped, tag = 'scoped memory for discriminator_block_forward.1']
    #allocation4 [shape = 'u8[65536]{0}', space=vmem, size = 0x10000, scoped, tag = 'input window, operand 3, single buffered']
    #allocation5 [shape = 's32[1]{0}', space=sflag, size = 0x4, scoped, tag = 'scoped memory for discriminator_block_forward.1']
    #allocation6 [shape = 'u8[65536]{0}', space=vmem, size = 0x10000, scoped, tag = 'input window, operand 5, single buffered']
    %12 = vsyncpa [#allocation3], 0
    %13 = vsyncpa [#allocation5], 0
    // Predicated region
    $region2: #{discriminator_block_forward.1} parent=1 // pred_check
      _
    $region3: #{discriminator_block_forward.1} parent=1 // pred_check_branch
      %15 = sbr.rel (0) target = $region5
    $region4: #{discriminator_block_forward.1} parent=1 // pred_region
      _
    $region5: #{discriminator_block_forward.1} parent=1 // pred_fallthru
      _
    // Predicated region
    $region6: #{discriminator_block_forward.1} parent=1 // pred_check
      _
    $region7: #{discriminator_block_forward.1} parent=1 // pred_check_branch
      %17 = sbr.rel (0) target = $region9
    $region8: #{discriminator_block_forward.1} parent=1 // pred_region
      %s19 = ssub.s32 2048, 2048
      %20 = vsyncadd [#allocation3], %s19
      %s21 = sshll.u32 [#allocation2], 4
      %s22 = int_to_ptr.vmem [resolvable:$true] %s21
      %27 = dma.hbm_to_vmem [thread:$0]  %s1, 2048, %s22, [#allocation3], 128, 128, 8
    $region9: #{discriminator_block_forward.1} parent=1 // pred_fallthru
      _
    // Predicated region
    $region10: #{discriminator_block_forward.1} parent=1 // pred_check
      _
    $region11: #{discriminator_block_forward.1} parent=1 // pred_check_branch
      %29 = sbr.rel (0) target = $region13
    $region12: #{discriminator_block_forward.1} parent=1 // pred_region
      _
    $region13: #{discriminator_block_forward.1} parent=1 // pred_fallthru
      _
    // Predicated region
    $region14: #{discriminator_block_forward.1} parent=1 // pred_check
      _
    $region15: #{discriminator_block_forward.1} parent=1 // pred_check_branch
      %31 = sbr.rel (0) target = $region17
    $region16: #{discriminator_block_forward.1} parent=1 // pred_region
      %s33 = ssub.s32 2048, 2048
      %34 = vsyncadd [#allocation5], %s33
      %s35 = sshll.u32 [#allocation4], 4
      %s36 = int_to_ptr.vmem [resolvable:$true] %s35
      %41 = dma.hbm_to_vmem [thread:$0]  %s3, 2048, %s36, [#allocation5], 128, 128, 8
    $region17: #{discriminator_block_forward.1} parent=1 // pred_fallthru
      _
    // Predicated region
    $region18: #{discriminator_block_forward.1} parent=1 // pred_check
      _
    $region19: #{discriminator_block_forward.1} parent=1 // pred_check_branch
      %43 = sbr.rel (0) target = $region21
    $region20: #{discriminator_block_forward.1} parent=1 // pred_region
      _
    $region21: #{discriminator_block_forward.1} parent=1 // pred_fallthru
      _
    // Predicated region
    $region22: #{discriminator_block_forward.1} parent=1 // pred_check
      _
    $region23: #{discriminator_block_forward.1} parent=1 // pred_check_branch
      %45 = sbr.rel (0) target = $region25
    $region24: #{discriminator_block_forward.1} parent=1 // pred_region
      %s47 = ssub.s32 2048, 2048
      %48 = vsyncadd [#allocation5], %s47
      %s49 = sshll.u32 [#allocation6], 4
      %s50 = int_to_ptr.vmem [resolvable:$true] %s49
      %55 = dma.hbm_to_vmem [thread:$0]  %s5, 2048, %s50, [#allocation5], 128, 128, 8
    $region25: #{discriminator_block_forward.1} parent=1 // pred_fallthru
      _
    // Predicated region
    $region26: #{discriminator_block_forward.1} parent=1 // pred_check
      _
    $region27: #{discriminator_block_forward.1} parent=1 // pred_check_branch
      %57 = sbr.rel (0) target = $region29
    $region28: #{discriminator_block_forward.1} parent=1 // pred_region
      _
    $region29: #{discriminator_block_forward.1} parent=1 // pred_fallthru
      _
    // Predicated region
    $region30: #{discriminator_block_forward.1} parent=1 // pred_check
      _
    $region31: #{discriminator_block_forward.1} parent=1 // pred_check_branch
      %59 = sbr.rel (0) target = $region33
    $region32: #{discriminator_block_forward.1} parent=1 // pred_region
      %60 = dma.done [#allocation3], 2048
    $region33: #{discriminator_block_forward.1} parent=1 // pred_fallthru
      _
    // Predicated region
    $region34: #{discriminator_block_forward.1} parent=1 // pred_check
      _
    $region35: #{discriminator_block_forward.1} parent=1 // pred_check_branch
      %62 = sbr.rel (0) target = $region37
    $region36: #{discriminator_block_forward.1} parent=1 // pred_region
      %63 = dma.done [#allocation5], 2048
    $region37: #{discriminator_block_forward.1} parent=1 // pred_fallthru
      _
    // Predicated region
    $region38: #{discriminator_block_forward.1} parent=1 // pred_check
      _
    $region39: #{discriminator_block_forward.1} parent=1 // pred_check_branch
      %65 = sbr.rel (0) target = $region41
    $region40: #{discriminator_block_forward.1} parent=1 // pred_region
      %66 = dma.done [#allocation5], 2048
    $region41: #{discriminator_block_forward.1} parent=1 // pred_fallthru
      _
    %v67 = vld [vmem:[%s0] sm:$0xff]
    %v68 = vld [vmem:[%s0 + $0x8] sm:$0xff]
    %v69 = vld [vmem:[#allocation2] sm:$0xff]
    %v70 = vld [vmem:[#allocation2 + $0x8] sm:$0xff]
    %v71 = vld [vmem:[#allocation2 + $0x10] sm:$0xff]
    %v72 = vld [vmem:[#allocation2 + $0x18] sm:$0xff]
    %v73 = vld [vmem:[#allocation2 + $0x20] sm:$0xff]
    %v74 = vld [vmem:[#allocation2 + $0x28] sm:$0xff]
    %v75 = vld [vmem:[#allocation2 + $0x30] sm:$0xff]
    %v76 = vld [vmem:[#allocation2 + $0x38] sm:$0xff]
    %v77 = vld [vmem:[#allocation2 + $0x40] sm:$0xff]
    %v78 = vld [vmem:[#allocation2 + $0x48] sm:$0xff]
    %v79 = vld [vmem:[#allocation2 + $0x50] sm:$0xff]
    %v80 = vld [vmem:[#allocation2 + $0x58] sm:$0xff]
    %v81 = vld [vmem:[#allocation2 + $0x60] sm:$0xff]
    %v82 = vld [vmem:[#allocation2 + $0x68] sm:$0xff]
    %v83 = vld [vmem:[#allocation2 + $0x70] sm:$0xff]
    %v84 = vld [vmem:[#allocation2 + $0x78] sm:$0xff]
    %v85 = vld [vmem:[%s2] sm:$0x1]
    %v87 = vlaneseq
    %v88 = vshrl.u32 %v87, 7
    %v89 = vsub.s32 0, %v88
    %v90 = vrot.slane %v85, %v89
    %92 = vmatprep.subr.mxu0 0.0
    %93 = vmatpush1.msra.mxu0 %v84
    %94 = vmatprep.subr.mxu0 0.0
    %95 = vmatpush1.msra.mxu0 %v83
    %96 = vmatprep.subr.mxu0 0.0
    %97 = vmatpush1.msra.mxu0 %v82
    %98 = vmatprep.subr.mxu0 0.0
    %99 = vmatpush1.msra.mxu0 %v81
    %100 = vmatprep.subr.mxu0 0.0
    %101 = vmatpush1.msra.mxu0 %v80
    %102 = vmatprep.subr.mxu0 0.0
    %103 = vmatpush1.msra.mxu0 %v79
    %104 = vmatprep.subr.mxu0 0.0
    %105 = vmatpush1.msra.mxu0 %v78
    %106 = vmatprep.subr.mxu0 0.0
    %107 = vmatpush1.msra.mxu0 %v77
    %108 = vmatprep.subr.mxu0 0.0
    %109 = vmatpush1.msra.mxu0 %v76
    %110 = vmatprep.subr.mxu0 0.0
    %111 = vmatpush1.msra.mxu0 %v75
    %112 = vmatprep.subr.mxu0 0.0
    %113 = vmatpush1.msra.mxu0 %v74
    %114 = vmatprep.subr.mxu0 0.0
    %115 = vmatpush1.msra.mxu0 %v73
    %116 = vmatprep.subr.mxu0 0.0
    %117 = vmatpush1.msra.mxu0 %v72
    %118 = vmatprep.subr.mxu0 0.0
    %119 = vmatpush1.msra.mxu0 %v71
    %120 = vmatprep.subr.mxu0 0.0
    %121 = vmatpush1.msra.mxu0 %v70
    %122 = vmatprep.subr.mxu0 0.0
    %123 = vmatpush1.msra.mxu0 %v69
    %124 = vmatprep.subr.mxu0 0.0
    %125 = vmatpush2.msra.mxu0 0.0
    %126 = vmatprep.subr.mxu0 0.0
    %127 = vmatpush2.msra.mxu0 0.0
    %128 = vmatprep.subr.mxu0 0.0
    %129 = vmatpush2.msra.mxu0 0.0
    %130 = vmatprep.subr.mxu0 0.0
    %131 = vmatpush2.msra.mxu0 0.0
    %132 = vmatprep.subr.mxu0 0.0
    %133 = vmatpush2.msra.mxu0 0.0
    %134 = vmatprep.subr.mxu0 0.0
    %135 = vmatpush2.msra.mxu0 0.0
    %136 = vmatprep.subr.mxu0 0.0
    %137 = vmatpush2.msra.mxu0 0.0
    %138 = vmatprep.subr.mxu0 0.0
    %139 = vmatpush2.msra.mxu0 0.0
    %140 = vmatprep.subr.mxu0 0.0
    %141 = vmatpush2.msra.mxu0 0.0
    %142 = vmatprep.subr.mxu0 0.0
    %143 = vmatpush2.msra.mxu0 0.0
    %144 = vmatprep.subr.mxu0 0.0
    %145 = vmatpush2.msra.mxu0 0.0
    %146 = vmatprep.subr.mxu0 0.0
    %147 = vmatpush2.msra.mxu0 0.0
    %148 = vmatprep.subr.mxu0 0.0
    %149 = vmatpush2.msra.mxu0 0.0
    %150 = vmatprep.subr.mxu0 0.0
    %151 = vmatpush2.msra.mxu0 0.0
    %152 = vmatprep.subr.mxu0 0.0
    %153 = vmatpush2.msra.mxu0 0.0
    %154 = vmatprep.subr.mxu0 0.0
    %155 = vmatpush2.msra.mxu0 0.0
    %156 = vmatprep.mubr.f32.mxu0 0.0
    %157 = vmatmul.mubr.f32.gmra.mxu0 %v67
    %v158 = vpop.f32.mrf.mxu0
    %v159 = vadd.f32 %v90, %v158
    %v160 = vpop.f32.mrf.mxu0
    %161 = vmatprep.mubr.f32.mxu0 0.0
    %162 = vmatmul.mubr.f32.gmra.mxu0 %v68
    %v163 = vpop.f32.mrf.mxu0
    %v164 = vadd.f32 %v90, %v163
    %v165 = vpop.f32.mrf.mxu0
    %166 = vdwg.mxu0
    %v167 = vmax.f32 %v159, 0.0
    %v168 = vmax.f32 %v164, 0.0
    %v169 = vld [vmem:[#allocation4] sm:$0xff]
    %v170 = vld [vmem:[#allocation4 + $0x8] sm:$0xff]
    %v171 = vld [vmem:[#allocation4 + $0x10] sm:$0xff]
    %v172 = vld [vmem:[#allocation4 + $0x18] sm:$0xff]
    %v173 = vld [vmem:[#allocation4 + $0x20] sm:$0xff]
    %v174 = vld [vmem:[#allocation4 + $0x28] sm:$0xff]
    %v175 = vld [vmem:[#allocation4 + $0x30] sm:$0xff]
    %v176 = vld [vmem:[#allocation4 + $0x38] sm:$0xff]
    %v177 = vld [vmem:[#allocation4 + $0x40] sm:$0xff]
    %v178 = vld [vmem:[#allocation4 + $0x48] sm:$0xff]
    %v179 = vld [vmem:[#allocation4 + $0x50] sm:$0xff]
    %v180 = vld [vmem:[#allocation4 + $0x58] sm:$0xff]
    %v181 = vld [vmem:[#allocation4 + $0x60] sm:$0xff]
    %v182 = vld [vmem:[#allocation4 + $0x68] sm:$0xff]
    %v183 = vld [vmem:[#allocation4 + $0x70] sm:$0xff]
    %v184 = vld [vmem:[#allocation4 + $0x78] sm:$0xff]
    %v185 = vld [vmem:[%s4] sm:$0x1]
    %v187 = vlaneseq
    %v188 = vshrl.u32 %v187, 7
    %v189 = vsub.s32 0, %v188
    %v190 = vrot.slane %v185, %v189
    %192 = vmatprep.subr.mxu0 0.0
    %193 = vmatpush1.msra.mxu0 %v184
    %194 = vmatprep.subr.mxu0 0.0
    %195 = vmatpush1.msra.mxu0 %v183
    %196 = vmatprep.subr.mxu0 0.0
    %197 = vmatpush1.msra.mxu0 %v182
    %198 = vmatprep.subr.mxu0 0.0
    %199 = vmatpush1.msra.mxu0 %v181
    %200 = vmatprep.subr.mxu0 0.0
    %201 = vmatpush1.msra.mxu0 %v180
    %202 = vmatprep.subr.mxu0 0.0
    %203 = vmatpush1.msra.mxu0 %v179
    %204 = vmatprep.subr.mxu0 0.0
    %205 = vmatpush1.msra.mxu0 %v178
    %206 = vmatprep.subr.mxu0 0.0
    %207 = vmatpush1.msra.mxu0 %v177
    %208 = vmatprep.subr.mxu0 0.0
    %209 = vmatpush1.msra.mxu0 %v176
    %210 = vmatprep.subr.mxu0 0.0
    %211 = vmatpush1.msra.mxu0 %v175
    %212 = vmatprep.subr.mxu0 0.0
    %213 = vmatpush1.msra.mxu0 %v174
    %214 = vmatprep.subr.mxu0 0.0
    %215 = vmatpush1.msra.mxu0 %v173
    %216 = vmatprep.subr.mxu0 0.0
    %217 = vmatpush1.msra.mxu0 %v172
    %218 = vmatprep.subr.mxu0 0.0
    %219 = vmatpush1.msra.mxu0 %v171
    %220 = vmatprep.subr.mxu0 0.0
    %221 = vmatpush1.msra.mxu0 %v170
    %222 = vmatprep.subr.mxu0 0.0
    %223 = vmatpush1.msra.mxu0 %v169
    %224 = vmatprep.subr.mxu0 0.0
    %225 = vmatpush2.msra.mxu0 0.0
    %226 = vmatprep.subr.mxu0 0.0
    %227 = vmatpush2.msra.mxu0 0.0
    %228 = vmatprep.subr.mxu0 0.0
    %229 = vmatpush2.msra.mxu0 0.0
    %230 = vmatprep.subr.mxu0 0.0
    %231 = vmatpush2.msra.mxu0 0.0
    %232 = vmatprep.subr.mxu0 0.0
    %233 = vmatpush2.msra.mxu0 0.0
    %234 = vmatprep.subr.mxu0 0.0
    %235 = vmatpush2.msra.mxu0 0.0
    %236 = vmatprep.subr.mxu0 0.0
    %237 = vmatpush2.msra.mxu0 0.0
    %238 = vmatprep.subr.mxu0 0.0
    %239 = vmatpush2.msra.mxu0 0.0
    %240 = vmatprep.subr.mxu0 0.0
    %241 = vmatpush2.msra.mxu0 0.0
    %242 = vmatprep.subr.mxu0 0.0
    %243 = vmatpush2.msra.mxu0 0.0
    %244 = vmatprep.subr.mxu0 0.0
    %245 = vmatpush2.msra.mxu0 0.0
    %246 = vmatprep.subr.mxu0 0.0
    %247 = vmatpush2.msra.mxu0 0.0
    %248 = vmatprep.subr.mxu0 0.0
    %249 = vmatpush2.msra.mxu0 0.0
    %250 = vmatprep.subr.mxu0 0.0
    %251 = vmatpush2.msra.mxu0 0.0
    %252 = vmatprep.subr.mxu0 0.0
    %253 = vmatpush2.msra.mxu0 0.0
    %254 = vmatprep.subr.mxu0 0.0
    %255 = vmatpush2.msra.mxu0 0.0
    %256 = vmatprep.mubr.f32.mxu0 0.0
    %257 = vmatmul.mubr.f32.gmra.mxu0 %v167
    %v258 = vpop.f32.mrf.mxu0
    %v259 = vadd.f32 %v190, %v258
    %v260 = vpop.f32.mrf.mxu0
    %261 = vmatprep.mubr.f32.mxu0 0.0
    %262 = vmatmul.mubr.f32.gmra.mxu0 %v168
    %v263 = vpop.f32.mrf.mxu0
    %v264 = vadd.f32 %v190, %v263
    %v265 = vpop.f32.mrf.mxu0
    %266 = vdwg.mxu0
    %v267 = vmax.f32 %v259, 0.0
    %v268 = vmax.f32 %v264, 0.0
    %v269 = vld [vmem:[#allocation6] sm:$0xff]
    %v270 = vld [vmem:[#allocation6 + $0x8] sm:$0xff]
    %v271 = vld [vmem:[#allocation6 + $0x10] sm:$0xff]
    %v272 = vld [vmem:[#allocation6 + $0x18] sm:$0xff]
    %v273 = vld [vmem:[#allocation6 + $0x20] sm:$0xff]
    %v274 = vld [vmem:[#allocation6 + $0x28] sm:$0xff]
    %v275 = vld [vmem:[#allocation6 + $0x30] sm:$0xff]
    %v276 = vld [vmem:[#allocation6 + $0x38] sm:$0xff]
    %v277 = vld [vmem:[#allocation6 + $0x40] sm:$0xff]
    %v278 = vld [vmem:[#allocation6 + $0x48] sm:$0xff]
    %v279 = vld [vmem:[#allocation6 + $0x50] sm:$0xff]
    %v280 = vld [vmem:[#allocation6 + $0x58] sm:$0xff]
    %v281 = vld [vmem:[#allocation6 + $0x60] sm:$0xff]
    %v282 = vld [vmem:[#allocation6 + $0x68] sm:$0xff]
    %v283 = vld [vmem:[#allocation6 + $0x70] sm:$0xff]
    %v284 = vld [vmem:[#allocation6 + $0x78] sm:$0xff]
    %v285 = vld [vmem:[%s6] sm:$0x1]
    %v287 = vlaneseq
    %v288 = vshrl.u32 %v287, 7
    %v289 = vsub.s32 0, %v288
    %v290 = vrot.slane %v285, %v289
    %292 = vmatprep.subr.mxu0 0.0
    %293 = vmatpush1.msra.mxu0 %v284
    %294 = vmatprep.subr.mxu0 0.0
    %295 = vmatpush1.msra.mxu0 %v283
    %296 = vmatprep.subr.mxu0 0.0
    %297 = vmatpush1.msra.mxu0 %v282
    %298 = vmatprep.subr.mxu0 0.0
    %299 = vmatpush1.msra.mxu0 %v281
    %300 = vmatprep.subr.mxu0 0.0
    %301 = vmatpush1.msra.mxu0 %v280
    %302 = vmatprep.subr.mxu0 0.0
    %303 = vmatpush1.msra.mxu0 %v279
    %304 = vmatprep.subr.mxu0 0.0
    %305 = vmatpush1.msra.mxu0 %v278
    %306 = vmatprep.subr.mxu0 0.0
    %307 = vmatpush1.msra.mxu0 %v277
    %308 = vmatprep.subr.mxu0 0.0
    %309 = vmatpush1.msra.mxu0 %v276
    %310 = vmatprep.subr.mxu0 0.0
    %311 = vmatpush1.msra.mxu0 %v275
    %312 = vmatprep.subr.mxu0 0.0
    %313 = vmatpush1.msra.mxu0 %v274
    %314 = vmatprep.subr.mxu0 0.0
    %315 = vmatpush1.msra.mxu0 %v273
    %316 = vmatprep.subr.mxu0 0.0
    %317 = vmatpush1.msra.mxu0 %v272
    %318 = vmatprep.subr.mxu0 0.0
    %319 = vmatpush1.msra.mxu0 %v271
    %320 = vmatprep.subr.mxu0 0.0
    %321 = vmatpush1.msra.mxu0 %v270
    %322 = vmatprep.subr.mxu0 0.0
    %323 = vmatpush1.msra.mxu0 %v269
    %324 = vmatprep.subr.mxu0 0.0
    %325 = vmatpush2.msra.mxu0 0.0
    %326 = vmatprep.subr.mxu0 0.0
    %327 = vmatpush2.msra.mxu0 0.0
    %328 = vmatprep.subr.mxu0 0.0
    %329 = vmatpush2.msra.mxu0 0.0
    %330 = vmatprep.subr.mxu0 0.0
    %331 = vmatpush2.msra.mxu0 0.0
    %332 = vmatprep.subr.mxu0 0.0
    %333 = vmatpush2.msra.mxu0 0.0
    %334 = vmatprep.subr.mxu0 0.0
    %335 = vmatpush2.msra.mxu0 0.0
    %336 = vmatprep.subr.mxu0 0.0
    %337 = vmatpush2.msra.mxu0 0.0
    %338 = vmatprep.subr.mxu0 0.0
    %339 = vmatpush2.msra.mxu0 0.0
    %340 = vmatprep.subr.mxu0 0.0
    %341 = vmatpush2.msra.mxu0 0.0
    %342 = vmatprep.subr.mxu0 0.0
    %343 = vmatpush2.msra.mxu0 0.0
    %344 = vmatprep.subr.mxu0 0.0
    %345 = vmatpush2.msra.mxu0 0.0
    %346 = vmatprep.subr.mxu0 0.0
    %347 = vmatpush2.msra.mxu0 0.0
    %348 = vmatprep.subr.mxu0 0.0
    %349 = vmatpush2.msra.mxu0 0.0
    %350 = vmatprep.subr.mxu0 0.0
    %351 = vmatpush2.msra.mxu0 0.0
    %352 = vmatprep.subr.mxu0 0.0
    %353 = vmatpush2.msra.mxu0 0.0
    %354 = vmatprep.subr.mxu0 0.0
    %355 = vmatpush2.msra.mxu0 0.0
    %356 = vmatprep.mubr.f32.mxu0 0.0
    %357 = vmatmul.mubr.f32.gmra.mxu0 %v267
    %v358 = vpop.f32.mrf.mxu0
    %v359 = vadd.f32 %v290, %v358
    %v360 = vpop.f32.mrf.mxu0
    %361 = vmatprep.mubr.f32.mxu0 0.0
    %362 = vmatmul.mubr.f32.gmra.mxu0 %v268
    %v363 = vpop.f32.mrf.mxu0
    %v364 = vadd.f32 %v290, %v363
    %v365 = vpop.f32.mrf.mxu0
    %366 = vdwg.mxu0
    %367 = vst [vmem:[%s7] sm:$0xff] %v359
    %368 = vst [vmem:[%s7 + $0x8] sm:$0xff] %v364
    // Predicated region
    $region42: #{discriminator_block_forward.1} parent=1 // pred_check
      _
    $region43: #{discriminator_block_forward.1} parent=1 // pred_check_branch
      %370 = sbr.rel (0) target = $region45
    $region44: #{discriminator_block_forward.1} parent=1 // pred_region
      _
    $region45: #{discriminator_block_forward.1} parent=1 // pred_fallthru
      _
    // Predicated region
    $region46: #{discriminator_block_forward.1} parent=1 // pred_check
      _
    $region47: #{discriminator_block_forward.1} parent=1 // pred_check_branch
      %372 = sbr.rel (0) target = $region49
    $region48: #{discriminator_block_forward.1} parent=1 // pred_region
      _
    $region49: #{discriminator_block_forward.1} parent=1 // pred_fallthru
      _
    %373 = vsyncpa [#allocation3], 1
    %374 = vsyncpa [#allocation5], 1

</llo_original>
